<compile_context>
chip_gen: v6e
topology: v6e:2x2x1
jax: 0.10.0
libtpu: 0.0.40
codegen_flags: <defaults>
</compile_context>

<pallas_src>
import functools
import math

import jax
import jax.numpy as jnp
from jax.experimental import pallas as pl
from jax.experimental.pallas import tpu as pltpu


def _round_up(x, m):
    return -(-x // m) * m


def _iou_kernel(pr_ref, gt_ref, out_ref, *, rows, tile_rows, chunk, n_chunks,
                tiles_per_core, cmp_threshold):
    """Accumulates per-core partial sums [inter, sum(pr), sum(gt)] as (8,128) slabs."""
    c = pl.program_id(0)          # core axis ("parallel")
    i = pl.program_id(1)          # tile axis ("arbitrary", reduction)

    @pl.when(i == 0)
    def _():
        out_ref[...] = jnp.zeros_like(out_ref)

    tile = c * tiles_per_core + i          # un-clamped global tile index
    row0 = tile * tile_rows                # first global row of this tile

    def chunk_body(k, carry):
        start = pl.multiple_of(k * chunk, chunk)
        g0 = row0 + start                  # global row of this chunk's first row
        pr_l = pr_ref[pl.ds(start, chunk), :].astype(jnp.float32)
        gt_l = gt_ref[pl.ds(start, chunk), :].astype(jnp.float32)
        # sigmoid(x) > t  <=>  x > log(t/(1-t)): no transcendentals in the hot loop.
        pred_t = pr_l > cmp_threshold

        def accum(pred, gt_v):
            inter = jnp.where(pred, gt_v, 0.0)
            pr_v = pred.astype(jnp.float32)
            g = chunk // 8
            # Reduce only across sublane groups -> pure VPU adds into the
            # resident (8, 128) output slabs; full cross-lane reduce is done
            # once in the wrapper.
            out_ref[0, 0, :, :] += inter.reshape(g, 8, 128).sum(axis=0)
            out_ref[0, 1, :, :] += pr_v.reshape(g, 8, 128).sum(axis=0)
            out_ref[0, 2, :, :] += gt_v.reshape(g, 8, 128).sum(axis=0)

        @pl.when(g0 + chunk <= rows)       # fully-valid chunk: no masking cost
        def _():
            accum(pred_t, gt_l)

        @pl.when(g0 + chunk > rows)        # boundary / overhang chunk: mask rows
        def _():
            rid = g0 + jax.lax.broadcasted_iota(jnp.int32, (chunk, 128), 0)
            valid = rid < rows
            accum(pred_t & valid, jnp.where(valid, gt_l, 0.0))

        return carry

    jax.lax.fori_loop(0, n_chunks, chunk_body, 0)


def iou_metric(y_pr, y_gt, eps=1e-7, threshold=0.5, activation="sigmoid",
               tile_rows=8192):
    """Pallas TPU implementation of IoUMetric.forward. Returns scalar float32."""
    assert y_pr.shape == y_gt.shape
    if activation == "sigmoid":
        assert 0.0 < float(threshold) < 1.0
        cmp_threshold = math.log(float(threshold) / (1.0 - float(threshold)))
    elif activation in (None, "none"):
        cmp_threshold = float(threshold)
    else:
        raise NotImplementedError("only sigmoid / None activation implemented")

    # Keep inputs as narrow as the caller provides (kernel is HBM-bound); only
    # bool is widened (int8) and non-float logits are widened to f32.
    if not jnp.issubdtype(y_pr.dtype, jnp.floating):
        y_pr = y_pr.astype(jnp.float32)
    if y_gt.dtype == jnp.bool_:
        y_gt = y_gt.astype(jnp.int8)

    total = int(y_pr.size)
    if total == 0:
        return jnp.float32(1.0)            # eps / eps

    pr_flat = y_pr.reshape(-1)             # free reshape (contiguous)
    gt_flat = y_gt.reshape(-1)
    main = (total // 128) * 128
    rem = total - main
    rows = main // 128

    inter_s = jnp.float32(0.0)
    pr_s = jnp.float32(0.0)
    gt_s = jnp.float32(0.0)

    if rows > 0:
        # Free reshape when rem == 0 (the common case): no padded copy of the inputs.
        pr2 = pr_flat[:main].reshape(rows, 128)
        gt2 = gt_flat[:main].reshape(rows, 128)
        # TODO(synk): when total % 128 != 0 the prefix slice above may still
        # materialize a copy in XLA; true zero-copy raggedness would need a
        # 1-D / manual-DMA layout.

        CHUNK = 1024
        if rows >= CHUNK:
            # Big blocks (multiple of CHUNK, <= rows) to amortize per-step overhead.
            tr = min(_round_up(int(tile_rows), CHUNK), (rows // CHUNK) * CHUNK)
            chunk = CHUNK
        else:
            # Small input: single block covering all rows (rounded to sublane=8;
            # the tiny pad is masked in-kernel via `rows`).
            tr = _round_up(rows, 8)
            chunk = tr
            if tr != rows:
                pr2 = jnp.pad(pr2, ((0, tr - rows), (0, 0)))
                gt2 = jnp.pad(gt2, ((0, tr - rows), (0, 0)))

        num_tiles = -(-rows // tr)
        num_cores = 2 if num_tiles >= 2 else 1        # v7x: 2 TCs; no-op on v5e/v6e
        tiles_per_core = -(-num_tiles // num_cores)
        last_tile = num_tiles - 1
        n_chunks = tr // chunk

        kernel = functools.partial(
            _iou_kernel, rows=rows, tile_rows=tr, chunk=chunk, n_chunks=n_chunks,
            tiles_per_core=tiles_per_core, cmp_threshold=float(cmp_threshold))

        # Clamp the block index so core 1's overhang tile (odd tile count) stays
        # in-bounds; the kernel masks it out via the un-clamped row index.
        in_map = lambda c, i: (jnp.minimum(c * tiles_per_core + i, last_tile), 0)

        out_bytes = num_cores * 3 * 8 * 128 * 4
        cost = pl.CostEstimate(
            flops=8 * rows * 128,
            transcendentals=0,
            bytes_accessed=int(pr2.size * pr2.dtype.itemsize
                               + gt2.size * gt2.dtype.itemsize + out_bytes))

        partials = pl.pallas_call(
            kernel,
            out_shape=jax.ShapeDtypeStruct((num_cores, 3, 8, 128), jnp.float32),
            grid=(num_cores, tiles_per_core),
            in_specs=[pl.BlockSpec((tr, 128), in_map),
                      pl.BlockSpec((tr, 128), in_map)],
            out_specs=pl.BlockSpec((1, 3, 8, 128), lambda c, i: (c, 0, 0, 0)),
            compiler_params=pltpu.CompilerParams(
                dimension_semantics=("parallel", "arbitrary"),
                vmem_limit_bytes=32 * 1024 * 1024,
            ),
            cost_estimate=cost,
        )(pr2, gt2)

        sums = jnp.sum(partials, axis=(0, 2, 3))      # combine cores + lanes
        inter_s, pr_s, gt_s = sums[0], sums[1], sums[2]

    if rem > 0 or rows == 0:
        # Ragged (<128 element) tail handled with plain jnp in the wrapper.
        tp = pr_flat[main:].astype(jnp.float32)
        tg = gt_flat[main:].astype(jnp.float32)
        tpred = tp > cmp_threshold
        inter_s = inter_s + jnp.sum(jnp.where(tpred, tg, 0.0))
        pr_s = pr_s + jnp.sum(tpred.astype(jnp.float32))
        gt_s = gt_s + jnp.sum(tg)

    eps = jnp.float32(eps)
    union = gt_s + pr_s - inter_s + eps
    return (inter_s + eps) / union


def _iou_ref(y_pr, y_gt, eps=1e-7, threshold=0.5):
    pr = jax.nn.sigmoid(y_pr.astype(jnp.float32))
    pr = (pr > threshold).astype(jnp.float32)
    gt = y_gt.astype(jnp.float32)
    inter = jnp.sum(gt * pr)
    union = jnp.sum(gt) + jnp.sum(pr) - inter + eps
    return (inter + eps) / union


if __name__ == "__main__":
    key = jax.random.PRNGKey(0)
    k1, k2 = jax.random.split(key)

    # Small shape consistent with a segmentation metric: logits + binary mask (NCHW).
    y_pr = jax.random.normal(k1, (2, 4, 16, 16), dtype=jnp.float32)
    y_gt = (jax.random.uniform(k2, (2, 4, 16, 16)) > 0.5).astype(jnp.float32)
    result = jax.block_until_ready(iou_metric(y_pr, y_gt, eps=1e-7, threshold=0.5))
    ref = _iou_ref(y_pr, y_gt)
    assert jnp.allclose(result, ref, atol=1e-5, rtol=1e-5), (result, ref)

    # Ragged shape (total % 128 != 0) -> kernel prefix + jnp tail path.
    y_pr2 = jax.random.normal(k1, (3, 1, 37, 41), dtype=jnp.float32)
    y_gt2 = (jax.random.uniform(k2, (3, 1, 37, 41)) > 0.5).astype(jnp.float32)
    r2 = jax.block_until_ready(iou_metric(y_pr2, y_gt2))
    assert jnp.allclose(r2, _iou_ref(y_pr2, y_gt2), atol=1e-5, rtol=1e-5), r2

    # Larger shape: exercises 8192-row tiles, the dual-core grid split,
    # boundary-tile masking, and narrow (bool -> int8) ground truth.
    y_pr3 = jax.random.normal(k1, (2, 4, 384, 512), dtype=jnp.float32)
    y_gt3 = jax.random.uniform(k2, (2, 4, 384, 512)) > 0.5      # bool mask
    r3 = jax.block_until_ready(iou_metric(y_pr3, y_gt3))
    assert jnp.allclose(r3, _iou_ref(y_pr3, y_gt3), atol=1e-5, rtol=1e-4), r3

    print("KERNEL_OK")
</pallas_src>

<mosaic_0001>
module attributes {stable_mosaic.version = 11 : i64} {
  func.func @_iou_kernel(%arg0: i32, %arg1: i32, %arg2: memref<16x128xf32, #tpu.memory_space<vmem>>, %arg3: memref<16x128xf32, #tpu.memory_space<vmem>>, %arg4: memref<1x3x8x128xf32, #tpu.memory_space<vmem>>) attributes {dimension_semantics = [#tpu.dimension_semantics<parallel>, #tpu.dimension_semantics<arbitrary>], iteration_bounds = array<i64: 1, 1>, scalar_prefetch = 0 : i64, scratch_operands = 0 : i64, tpu.core_type = #tpu.core_type<tc>, window_params = [{transform_indices = @transform_0, window_bounds = array<i64: 16, 128>}, {transform_indices = @transform_1, window_bounds = array<i64: 16, 128>}, {transform_indices = @transform_2, window_bounds = array<i64: 1, 3, 8, 128>}]} {
    %c0_i32 = arith.constant 0 : i32
    %0 = arith.cmpi eq, %arg1, %c0_i32 : i32
    %1 = arith.extui %0 : i1 to i32
    %c0_i32_0 = arith.constant 0 : i32
    %2 = arith.cmpi ne, %1, %c0_i32_0 : i32
    scf.if %2 {
      %cst_11 = arith.constant 0.000000e+00 : f32
      %23 = vector.broadcast %cst_11 : f32 to vector<1x3x8x128xf32>
      %c0_12 = arith.constant 0 : index
      %c0_13 = arith.constant 0 : index
      %c0_14 = arith.constant 0 : index
      %c0_15 = arith.constant 0 : index
      %24 = vector.load %arg4[%c0_12, %c0_13, %c0_14, %c0_15] : memref<1x3x8x128xf32, #tpu.memory_space<vmem>>, vector<1x3x8x128xf32>
      tpu.vector_store %arg4[%c0_12, %c0_13, %c0_14, %c0_15], %23 {strides = array<i32>} : memref<1x3x8x128xf32, #tpu.memory_space<vmem>>, vector<1x3x8x128xf32>,
    } else {
    }
    %c1_i32 = arith.constant 1 : i32
    %3 = arith.muli %arg0, %c1_i32 : i32
    %4 = arith.addi %3, %arg1 : i32
    %c16_i32 = arith.constant 16 : i32
    %5 = arith.muli %4, %c16_i32 : i32
    %c0_i32_1 = arith.constant 0 : i32
    %c16_i32_2 = arith.constant 16 : i32
    %6 = arith.muli %c0_i32_1, %c16_i32_2 : i32
    %7 = tpu.assume_multiple %6, 16 : i32
    %8 = arith.addi %5, %7 : i32
    %9 = arith.index_cast %7 : i32 to index
    %c0 = arith.constant 0 : index
    %10 = vector.load %arg2[%9, %c0] : memref<16x128xf32, #tpu.memory_space<vmem>>, vector<16x128xf32>
    %11 = arith.index_cast %7 : i32 to index
    %c0_3 = arith.constant 0 : index
    %12 = vector.load %arg3[%11, %c0_3] : memref<16x128xf32, #tpu.memory_space<vmem>>, vector<16x128xf32>
    %cst = arith.constant 0.000000e+00 : f32
    %13 = vector.broadcast %cst : f32 to vector<16x128xf32>
    %14 = arith.cmpf ogt, %10, %13 : vector<16x128xf32>
    %c16_i32_4 = arith.constant 16 : i32
    %15 = arith.addi %8, %c16_i32_4 : i32
    %c16_i32_5 = arith.constant 16 : i32
    %16 = arith.cmpi sle, %15, %c16_i32_5 : i32
    %17 = arith.extui %16 : i1 to i32
    %c0_i32_6 = arith.constant 0 : i32
    %18 = arith.cmpi ne, %17, %c0_i32_6 : i32
    scf.if %18 {
      %cst_11 = arith.constant 0.000000e+00 : f32
      %23 = vector.broadcast %cst_11 : f32 to vector<16x128xf32>
      %24 = arith.select %14, %12, %23 : vector<16x128xi1>, vector<16x128xf32>
      %25 = arith.extui %14 : vector<16x128xi1> to vector<16x128xi32>
      %26 = arith.sitofp %25 : vector<16x128xi32> to vector<16x128xf32>
      %c0_12 = arith.constant 0 : index
      %c0_13 = arith.constant 0 : index
      %c0_14 = arith.constant 0 : index
      %c0_15 = arith.constant 0 : index
      %27 = vector.load %arg4[%c0_12, %c0_13, %c0_14, %c0_15] : memref<1x3x8x128xf32, #tpu.memory_space<vmem>>, vector<1x1x8x128xf32>
      %28 = vector.shape_cast %27 : vector<1x1x8x128xf32> to vector<8x128xf32>
      %29 = vector.shape_cast %24 : vector<16x128xf32> to vector<2x8x128xf32>
      %cst_16 = arith.constant dense<0.000000e+00> : vector<8x128xf32>
      %30 = vector.multi_reduction <add>, %29, %cst_16 [0] : vector<2x8x128xf32> to vector<8x128xf32>
      %31 = arith.addf %28, %30 : vector<8x128xf32>
      %c0_17 = arith.constant 0 : index
      %c0_18 = arith.constant 0 : index
      %c0_19 = arith.constant 0 : index
      %c0_20 = arith.constant 0 : index
      %32 = vector.load %arg4[%c0_17, %c0_18, %c0_19, %c0_20] : memref<1x3x8x128xf32, #tpu.memory_space<vmem>>, vector<1x1x8x128xf32>
      %33 = vector.shape_cast %32 : vector<1x1x8x128xf32> to vector<8x128xf32>
      %34 = vector.shape_cast %31 : vector<8x128xf32> to vector<1x1x8x128xf32>
      tpu.vector_store %arg4[%c0_17, %c0_18, %c0_19, %c0_20], %34 {strides = array<i32>} : memref<1x3x8x128xf32, #tpu.memory_space<vmem>>, vector<1x1x8x128xf32>,
      %c0_21 = arith.constant 0 : index
      %c1 = arith.constant 1 : index
      %c0_22 = arith.constant 0 : index
      %c0_23 = arith.constant 0 : index
      %35 = vector.load %arg4[%c0_21, %c1, %c0_22, %c0_23] : memref<1x3x8x128xf32, #tpu.memory_space<vmem>>, vector<1x1x8x128xf32>
      %36 = vector.shape_cast %35 : vector<1x1x8x128xf32> to vector<8x128xf32>
      %37 = vector.shape_cast %26 : vector<16x128xf32> to vector<2x8x128xf32>
      %cst_24 = arith.constant dense<0.000000e+00> : vector<8x128xf32>
      %38 = vector.multi_reduction <add>, %37, %cst_24 [0] : vector<2x8x128xf32> to vector<8x128xf32>
      %39 = arith.addf %36, %38 : vector<8x128xf32>
      %c0_25 = arith.constant 0 : index
      %c1_26 = arith.constant 1 : index
      %c0_27 = arith.constant 0 : index
      %c0_28 = arith.constant 0 : index
      %40 = vector.load %arg4[%c0_25, %c1_26, %c0_27, %c0_28] : memref<1x3x8x128xf32, #tpu.memory_space<vmem>>, vector<1x1x8x128xf32>
      %41 = vector.shape_cast %40 : vector<1x1x8x128xf32> to vector<8x128xf32>
      %42 = vector.shape_cast %39 : vector<8x128xf32> to vector<1x1x8x128xf32>
      tpu.vector_store %arg4[%c0_25, %c1_26, %c0_27, %c0_28], %42 {strides = array<i32>} : memref<1x3x8x128xf32, #tpu.memory_space<vmem>>, vector<1x1x8x128xf32>,
      %c0_29 = arith.constant 0 : index
      %c2 = arith.constant 2 : index
      %c0_30 = arith.constant 0 : index
      %c0_31 = arith.constant 0 : index
      %43 = vector.load %arg4[%c0_29, %c2, %c0_30, %c0_31] : memref<1x3x8x128xf32, #tpu.memory_space<vmem>>, vector<1x1x8x128xf32>
      %44 = vector.shape_cast %43 : vector<1x1x8x128xf32> to vector<8x128xf32>
      %45 = vector.shape_cast %12 : vector<16x128xf32> to vector<2x8x128xf32>
      %cst_32 = arith.constant dense<0.000000e+00> : vector<8x128xf32>
      %46 = vector.multi_reduction <add>, %45, %cst_32 [0] : vector<2x8x128xf32> to vector<8x128xf32>
      %47 = arith.addf %44, %46 : vector<8x128xf32>
      %c0_33 = arith.constant 0 : index
      %c2_34 = arith.constant 2 : index
      %c0_35 = arith.constant 0 : index
      %c0_36 = arith.constant 0 : index
      %48 = vector.load %arg4[%c0_33, %c2_34, %c0_35, %c0_36] : memref<1x3x8x128xf32, #tpu.memory_space<vmem>>, vector<1x1x8x128xf32>
      %49 = vector.shape_cast %48 : vector<1x1x8x128xf32> to vector<8x128xf32>
      %50 = vector.shape_cast %47 : vector<8x128xf32> to vector<1x1x8x128xf32>
      tpu.vector_store %arg4[%c0_33, %c2_34, %c0_35, %c0_36], %50 {strides = array<i32>} : memref<1x3x8x128xf32, #tpu.memory_space<vmem>>, vector<1x1x8x128xf32>,
    } else {
    }
    %c16_i32_7 = arith.constant 16 : i32
    %19 = arith.addi %8, %c16_i32_7 : i32
    %c16_i32_8 = arith.constant 16 : i32
    %20 = arith.cmpi sgt, %19, %c16_i32_8 : i32
    %21 = arith.extui %20 : i1 to i32
    %c0_i32_9 = arith.constant 0 : i32
    %22 = arith.cmpi ne, %21, %c0_i32_9 : i32
    scf.if %22 {
      %23 = tpu.iota {dimensions = array<i32: 0>} : vector<16x128xi32>
      %24 = vector.broadcast %8 : i32 to vector<16x128xi32>
      %25 = arith.addi %24, %23 : vector<16x128xi32>
      %c16_i32_11 = arith.constant 16 : i32
      %26 = vector.broadcast %c16_i32_11 : i32 to vector<16x128xi32>
      %27 = arith.cmpi slt, %25, %26 : vector<16x128xi32>
      %28 = arith.andi %14, %27 : vector<16x128xi1>
      %cst_12 = arith.constant 0.000000e+00 : f32
      %29 = vector.broadcast %cst_12 : f32 to vector<16x128xf32>
      %30 = arith.select %27, %12, %29 : vector<16x128xi1>, vector<16x128xf32>
      %cst_13 = arith.constant 0.000000e+00 : f32
      %31 = vector.broadcast %cst_13 : f32 to vector<16x128xf32>
      %32 = arith.select %28, %30, %31 : vector<16x128xi1>, vector<16x128xf32>
      %33 = arith.extui %28 : vector<16x128xi1> to vector<16x128xi32>
      %34 = arith.sitofp %33 : vector<16x128xi32> to vector<16x128xf32>
      %c0_14 = arith.constant 0 : index
      %c0_15 = arith.constant 0 : index
      %c0_16 = arith.constant 0 : index
      %c0_17 = arith.constant 0 : index
      %35 = vector.load %arg4[%c0_14, %c0_15, %c0_16, %c0_17] : memref<1x3x8x128xf32, #tpu.memory_space<vmem>>, vector<1x1x8x128xf32>
      %36 = vector.shape_cast %35 : vector<1x1x8x128xf32> to vector<8x128xf32>
      %37 = vector.shape_cast %32 : vector<16x128xf32> to vector<2x8x128xf32>
      %cst_18 = arith.constant dense<0.000000e+00> : vector<8x128xf32>
      %38 = vector.multi_reduction <add>, %37, %cst_18 [0] : vector<2x8x128xf32> to vector<8x128xf32>
      %39 = arith.addf %36, %38 : vector<8x128xf32>
      %c0_19 = arith.constant 0 : index
      %c0_20 = arith.constant 0 : index
      %c0_21 = arith.constant 0 : index
      %c0_22 = arith.constant 0 : index
      %40 = vector.load %arg4[%c0_19, %c0_20, %c0_21, %c0_22] : memref<1x3x8x128xf32, #tpu.memory_space<vmem>>, vector<1x1x8x128xf32>
      %41 = vector.shape_cast %40 : vector<1x1x8x128xf32> to vector<8x128xf32>
      %42 = vector.shape_cast %39 : vector<8x128xf32> to vector<1x1x8x128xf32>
      tpu.vector_store %arg4[%c0_19, %c0_20, %c0_21, %c0_22], %42 {strides = array<i32>} : memref<1x3x8x128xf32, #tpu.memory_space<vmem>>, vector<1x1x8x128xf32>,
      %c0_23 = arith.constant 0 : index
      %c1 = arith.constant 1 : index
      %c0_24 = arith.constant 0 : index
      %c0_25 = arith.constant 0 : index
      %43 = vector.load %arg4[%c0_23, %c1, %c0_24, %c0_25] : memref<1x3x8x128xf32, #tpu.memory_space<vmem>>, vector<1x1x8x128xf32>
      %44 = vector.shape_cast %43 : vector<1x1x8x128xf32> to vector<8x128xf32>
      %45 = vector.shape_cast %34 : vector<16x128xf32> to vector<2x8x128xf32>
      %cst_26 = arith.constant dense<0.000000e+00> : vector<8x128xf32>
      %46 = vector.multi_reduction <add>, %45, %cst_26 [0] : vector<2x8x128xf32> to vector<8x128xf32>
      %47 = arith.addf %44, %46 : vector<8x128xf32>
      %c0_27 = arith.constant 0 : index
      %c1_28 = arith.constant 1 : index
      %c0_29 = arith.constant 0 : index
      %c0_30 = arith.constant 0 : index
      %48 = vector.load %arg4[%c0_27, %c1_28, %c0_29, %c0_30] : memref<1x3x8x128xf32, #tpu.memory_space<vmem>>, vector<1x1x8x128xf32>
      %49 = vector.shape_cast %48 : vector<1x1x8x128xf32> to vector<8x128xf32>
      %50 = vector.shape_cast %47 : vector<8x128xf32> to vector<1x1x8x128xf32>
      tpu.vector_store %arg4[%c0_27, %c1_28, %c0_29, %c0_30], %50 {strides = array<i32>} : memref<1x3x8x128xf32, #tpu.memory_space<vmem>>, vector<1x1x8x128xf32>,
      %c0_31 = arith.constant 0 : index
      %c2 = arith.constant 2 : index
      %c0_32 = arith.constant 0 : index
      %c0_33 = arith.constant 0 : index
      %51 = vector.load %arg4[%c0_31, %c2, %c0_32, %c0_33] : memref<1x3x8x128xf32, #tpu.memory_space<vmem>>, vector<1x1x8x128xf32>
      %52 = vector.shape_cast %51 : vector<1x1x8x128xf32> to vector<8x128xf32>
      %53 = vector.shape_cast %30 : vector<16x128xf32> to vector<2x8x128xf32>
      %cst_34 = arith.constant dense<0.000000e+00> : vector<8x128xf32>
      %54 = vector.multi_reduction <add>, %53, %cst_34 [0] : vector<2x8x128xf32> to vector<8x128xf32>
      %55 = arith.addf %52, %54 : vector<8x128xf32>
      %c0_35 = arith.constant 0 : index
      %c2_36 = arith.constant 2 : index
      %c0_37 = arith.constant 0 : index
      %c0_38 = arith.constant 0 : index
      %56 = vector.load %arg4[%c0_35, %c2_36, %c0_37, %c0_38] : memref<1x3x8x128xf32, #tpu.memory_space<vmem>>, vector<1x1x8x128xf32>
      %57 = vector.shape_cast %56 : vector<1x1x8x128xf32> to vector<8x128xf32>
      %58 = vector.shape_cast %55 : vector<8x128xf32> to vector<1x1x8x128xf32>
      tpu.vector_store %arg4[%c0_35, %c2_36, %c0_37, %c0_38], %58 {strides = array<i32>} : memref<1x3x8x128xf32, #tpu.memory_space<vmem>>, vector<1x1x8x128xf32>,
    } else {
    }
    %c1_i32_10 = arith.constant 1 : i32
    return
  }
  func.func @transform_0(%arg0: i32, %arg1: i32) -> (i32, i32) {
    %c1_i32 = arith.constant 1 : i32
    %0 = arith.muli %arg0, %c1_i32 : i32
    %1 = arith.addi %0, %arg1 : i32
    %c0_i32 = arith.constant 0 : i32
    %2 = arith.minsi %1, %c0_i32 : i32
    %c0_i32_0 = arith.constant 0 : i32
    %c0_i32_1 = arith.constant 0 : i32
    return %2, %c0_i32_0 : i32, i32
  }
  func.func @transform_1(%arg0: i32, %arg1: i32) -> (i32, i32) {
    %c1_i32 = arith.constant 1 : i32
    %0 = arith.muli %arg0, %c1_i32 : i32
    %1 = arith.addi %0, %arg1 : i32
    %c0_i32 = arith.constant 0 : i32
    %2 = arith.minsi %1, %c0_i32 : i32
    %c0_i32_0 = arith.constant 0 : i32
    %c0_i32_1 = arith.constant 0 : i32
    return %2, %c0_i32_0 : i32, i32
  }
  func.func @transform_2(%arg0: i32, %arg1: i32) -> (i32, i32, i32, i32) {
    %c0_i32 = arith.constant 0 : i32
    %c0_i32_0 = arith.constant 0 : i32
    %c0_i32_1 = arith.constant 0 : i32
    %c0_i32_2 = arith.constant 0 : i32
    return %arg0, %c0_i32, %c0_i32_0, %c0_i32_1 : i32, i32, i32, i32
  }
}

</mosaic_0001>

<llo_original>
// kernel: tpu_custom_call.1
$region0: #{tpu_custom_call.1}
  #allocation0 [shape = 'u32[]', space=smem, size = 0x4, offset = 0x4, fixed_abs, tag = 'smem constant byte address 0x4 - core index']
  #allocation1 [shape = 'u32[144,128]{1,0:T(1,128)}', space=vmem, size = 0x12000, scoped, tag = 'internal scratch']
  %s0 = inlined_call_operand.hbm [shape: f32[16,128], index: 0, kind: input, shape index: {}]
  %s1 = inlined_call_operand.hbm [shape: f32[16,128], index: 1, kind: input, shape index: {}]
  %s2 = inlined_call_operand.hbm [shape: f32[1,3,8,128], index: 2, kind: output, shape index: {}]
  %s3 = sld [smem:[#allocation0]]
  $region38: #{tpu_custom_call.1} parent=0
    _
  %s5 = ssub.s32 1, %s3
  %s6 = scalar_select 0, %s5, %s3
  $region1: #{tpu_custom_call.1} parent=0
    #allocation2 [shape = 'u8[8192]{0}', space=vmem, size = 0x2000, scoped, tag = 'input window, operand 0, single buffered']
    #allocation3 [shape = 's32[1]{0}', space=sflag, size = 0x4, scoped, tag = 'scoped memory for tpu_custom_call.1']
    #allocation4 [shape = 's32[1]{0}', space=sflag, size = 0x4, scoped, tag = 'scoped memory for tpu_custom_call.1']
    #allocation5 [shape = 'u8[8192]{0}', space=vmem, size = 0x2000, scoped, tag = 'input window, operand 1, single buffered']
    #allocation6 [shape = 's32[1]{0}', space=sflag, size = 0x4, scoped, tag = 'scoped memory for tpu_custom_call.1']
    #allocation7 [shape = 'u8[12288]{0}', space=vmem, size = 0x3000, scoped, tag = 'output window, operand 0, single buffered']
    %7 = vsyncpa [#allocation3], 0
    %8 = vsyncpa [#allocation6], 0
    %9 = vsyncpa [#allocation4], 0
    // Predicated region
    $region2: #{tpu_custom_call.1} parent=1 // pred_check
      _
    $region3: #{tpu_custom_call.1} parent=1 // pred_check_branch
      %11 = sbr.rel (0) target = $region5
    $region4: #{tpu_custom_call.1} parent=1 // pred_region
      %s12 = sadd.s32 0, 0
      %p13 = scmp.lt.s32.totalorder %s12, 0
      %s14 = scalar_select %p13, %s12, 0
      %s15 = smul.u32 2, %s14
      %s17 = ssub.s32 256, 256
      %18 = vsyncadd [#allocation3], %s17
      %s19 = smul.addr %s15, 128
      %s20 = scalar_lea.hbm %s0, %s19
      %s21 = sshll.u32 [#allocation2], 4
      %s22 = int_to_ptr.vmem [resolvable:$true] %s21
      %27 = dma.hbm_to_vmem [thread:$0]  %s20, 256, %s22, [#allocation3], 128, 128, 8
    $region5: #{tpu_custom_call.1} parent=1 // pred_fallthru
      _
    // Predicated region
    $region6: #{tpu_custom_call.1} parent=1 // pred_check
      _
    $region7: #{tpu_custom_call.1} parent=1 // pred_check_branch
      %29 = sbr.rel (0) target = $region9
    $region8: #{tpu_custom_call.1} parent=1 // pred_region
      %s30 = sadd.s32 0, 0
      %p31 = scmp.lt.s32.totalorder %s30, 0
      %s32 = scalar_select %p31, %s30, 0
      %s33 = smul.u32 2, %s32
      %s35 = ssub.s32 256, 256
      %36 = vsyncadd [#allocation6], %s35
      %s37 = smul.addr %s33, 128
      %s38 = scalar_lea.hbm %s1, %s37
      %s39 = sshll.u32 [#allocation5], 4
      %s40 = int_to_ptr.vmem [resolvable:$true] %s39
      %45 = dma.hbm_to_vmem [thread:$0]  %s38, 256, %s40, [#allocation6], 128, 128, 8
    $region9: #{tpu_custom_call.1} parent=1 // pred_fallthru
      _
    // Predicated region
    $region10: #{tpu_custom_call.1} parent=1 // pred_check
      _
    $region11: #{tpu_custom_call.1} parent=1 // pred_check_branch
      %47 = sbr.rel (0) target = $region13
    $region12: #{tpu_custom_call.1} parent=1 // pred_region
      %48 = dma.done [#allocation3], 256
    $region13: #{tpu_custom_call.1} parent=1 // pred_fallthru
      _
    // Predicated region
    $region14: #{tpu_custom_call.1} parent=1 // pred_check
      _
    $region15: #{tpu_custom_call.1} parent=1 // pred_check_branch
      %50 = sbr.rel (0) target = $region17
    $region16: #{tpu_custom_call.1} parent=1 // pred_region
      %51 = dma.done [#allocation6], 256
    $region17: #{tpu_custom_call.1} parent=1 // pred_fallthru
      _
    %s52 = sadd.s32 0, 0
    %p53 = scmp.lt.s32.totalorder %s52, 0
    %s54 = scalar_select %p53, %s52, 0
    %s55 = smul.u32 2, %s54
    %s56 = sadd.s32 0, 0
    %p57 = scmp.lt.s32.totalorder %s56, 0
    %s58 = scalar_select %p57, %s56, 0
    %s59 = smul.u32 2, %s58
    %p60 = scmp.eq.s32.totalorder 0, 0
    // Predicated region
    $region18: #{tpu_custom_call.1} parent=1 // pred_check
      %p61 = pneg %p60
    $region19: #{tpu_custom_call.1} parent=1 // pred_check_branch
      %63 = sbr.rel (%p61) target = $region21
    $region20: #{tpu_custom_call.1} parent=1 // pred_region
      %64 = vst [vmem:[#allocation7] sm:$0xff] 0.0
      %65 = vst [vmem:[#allocation7 + $0x8] sm:$0xff] 0.0
      %66 = vst [vmem:[#allocation7 + $0x10] sm:$0xff] 0.0
    $region21: #{tpu_custom_call.1} parent=1 // pred_fallthru
      _
    %s67 = sadd.s32 0, 0
    %s68 = smul.u32 %s67, 16
    %s69 = sadd.s32 %s68, 0
    %v70 = vld [vmem:[#allocation2] sm:$0xff]
    %v71 = vld [vmem:[#allocation2 + $0x8] sm:$0xff]
    %v72 = vld [vmem:[#allocation5] sm:$0xff]
    %v73 = vld [vmem:[#allocation5 + $0x8] sm:$0xff]
    %vm74 = vcmp.gt.f32.partialorder %v70, 0.0
    %vm75 = vcmp.gt.f32.partialorder %v71, 0.0
    %s76 = sadd.s32 %s69, 16
    %p77 = scmp.le.s32.totalorder %s76, 16
    // Predicated region
    $region22: #{tpu_custom_call.1} parent=1 // pred_check
      %p78 = pneg %p77
    $region23: #{tpu_custom_call.1} parent=1 // pred_check_branch
      %80 = sbr.rel (%p78) target = $region25
    $region24: #{tpu_custom_call.1} parent=1 // pred_region
      %v81 = vsel %vm74, %v72, 0.0
      %v82 = vsel %vm75, %v73, 0.0
      %v83 = vsel %vm74, 1, 0
      %v84 = vsel %vm75, 1, 0
      %v85 = vcvt.s32.f32 %v83
      %v86 = vcvt.s32.f32 %v84
      %v87 = vld [vmem:[#allocation7] sm:$0xff]
      %v88 = vadd.f32 %v81, %v82
      %v89 = vadd.f32 %v87, %v88
      %90 = vst [vmem:[#allocation7] sm:$0xff] %v89
      %s91 = scalar_lea.vmem [#allocation7], 8
      %v92 = vld [vmem:[%s91] sm:$0xff]
      %v93 = vadd.f32 %v85, %v86
      %v94 = vadd.f32 %v92, %v93
      %95 = vst [vmem:[%s91] sm:$0xff] %v94
      %s96 = scalar_lea.vmem [#allocation7], 16
      %v97 = vld [vmem:[%s96] sm:$0xff]
      %v98 = vadd.f32 %v72, %v73
      %v99 = vadd.f32 %v97, %v98
      %100 = vst [vmem:[%s96] sm:$0xff] %v99
    $region25: #{tpu_custom_call.1} parent=1 // pred_fallthru
      _
    %p101 = scmp.gt.s32.totalorder %s76, 16
    // Predicated region
    $region26: #{tpu_custom_call.1} parent=1 // pred_check
      %p102 = pneg %p101
    $region27: #{tpu_custom_call.1} parent=1 // pred_check_branch
      %104 = sbr.rel (%p102) target = $region29
    $region28: #{tpu_custom_call.1} parent=1 // pred_region
      %v105 = vlaneseq
      %v106 = vshrl.u32 %v105, 7
      %v107 = vadd.s32 %v106, 8
      %v108 = vstv %s69
      %v109 = vadd.s32 %v108, %v106
      %v110 = vadd.s32 %v108, %v107
      %vm111 = vcmp.lt.s32.totalorder %v109, 16
      %vm112 = vcmp.lt.s32.totalorder %v110, 16
      %vm113 = vmand %vm74, %vm111
      %vm114 = vmand %vm75, %vm112
      %v115 = vsel %vm111, %v72, 0.0
      %v116 = vsel %vm112, %v73, 0.0
      %v117 = vsel %vm113, %v115, 0.0
      %v118 = vsel %vm114, %v116, 0.0
      %v119 = vsel %vm113, 1, 0
      %v120 = vsel %vm114, 1, 0
      %v121 = vcvt.s32.f32 %v119
      %v122 = vcvt.s32.f32 %v120
      %v123 = vld [vmem:[#allocation7] sm:$0xff]
      %v124 = vadd.f32 %v117, %v118
      %v125 = vadd.f32 %v123, %v124
      %126 = vst [vmem:[#allocation7] sm:$0xff] %v125
      %s127 = scalar_lea.vmem [#allocation7], 8
      %v128 = vld [vmem:[%s127] sm:$0xff]
      %v129 = vadd.f32 %v121, %v122
      %v130 = vadd.f32 %v128, %v129
      %131 = vst [vmem:[%s127] sm:$0xff] %v130
      %s132 = scalar_lea.vmem [#allocation7], 16
      %v133 = vld [vmem:[%s132] sm:$0xff]
      %v134 = vadd.f32 %v115, %v116
      %v135 = vadd.f32 %v133, %v134
      %136 = vst [vmem:[%s132] sm:$0xff] %v135
    $region29: #{tpu_custom_call.1} parent=1 // pred_fallthru
      _
    // Predicated region
    $region30: #{tpu_custom_call.1} parent=1 // pred_check
      _
    $region31: #{tpu_custom_call.1} parent=1 // pred_check_branch
      %138 = sbr.rel (0) target = $region33
    $region32: #{tpu_custom_call.1} parent=1 // pred_region
      %s140 = ssub.s32 384, 384
      %141 = vsyncadd [#allocation4], %s140
      %s142 = sshll.u32 [#allocation7], 4
      %s143 = int_to_ptr.vmem [resolvable:$true] %s142
      %148 = dma.vmem_to_hbm [thread:$0]  %s143, 384, %s2, [#allocation4], 128, 128, 8
    $region33: #{tpu_custom_call.1} parent=1 // pred_fallthru
      _
    // Predicated region
    $region34: #{tpu_custom_call.1} parent=1 // pred_check
      _
    $region35: #{tpu_custom_call.1} parent=1 // pred_check_branch
      %150 = sbr.rel (0) target = $region37
    $region36: #{tpu_custom_call.1} parent=1 // pred_region
      %151 = dma.done [#allocation4], 384
    $region37: #{tpu_custom_call.1} parent=1 // pred_fallthru
      _
    %152 = vsyncpa [#allocation3], 1
    %153 = vsyncpa [#allocation6], 1
    %154 = vsyncpa [#allocation4], 1

</llo_original>
